<compile_context>
chip_gen: v6e
topology: v6e:2x2x1
jax: 0.10.0
libtpu: 0.0.40
codegen_flags: <defaults>
</compile_context>

<pallas_src>
import functools

import jax
import jax.numpy as jnp
from jax.experimental import pallas as pl
from jax.experimental.pallas import tpu as pltpu


def _round_up(x, m):
    return (x + m - 1) // m * m


def _vmem_capacity_bytes():
    """Physical VMEM per TensorCore; conservative fallback if unavailable."""
    try:
        info = pltpu.get_tpu_info()
        cap = getattr(info, "vmem_capacity_bytes", None)
        if cap:
            return int(cap)
    except Exception:
        pass
    return 64 * 1024 * 1024  # v7x per-TC VMEM (safe lower bound on all gens)


def _effective_tile(dim, tile, align):
    """Returns (tile_eff, padded_dim).

    If the whole dimension fits in one block we use the unpadded full dim
    (legal even when unaligned), so no pad/copy and no trailing slice.
    """
    if dim <= tile:
        return dim, dim
    t = _round_up(min(tile, dim), align)
    return t, _round_up(dim, t)


def _auto_square_tile(K, tk, in_elt, w_elt, out_elt, needs_scratch, cap):
    """Pick the largest square output tile whose working set fits the chip.

    ~2048 on 128 MiB chips (v6e), ~1024 on 64 MiB chips (v7x).  Small problems
    clamp down via _effective_tile anyway.
    """
    budget = int(0.55 * cap)
    tk_eff = min(tk, _round_up(K, 128))
    for t in (2048, 1024, 512, 256):
        need = (2 * t * tk_eff * in_elt            # double-buffered x tile
                + 2 * tk_eff * t * w_elt           # double-buffered w tile
                + 2 * t * t * out_elt              # double-buffered out tile
                + (t * t * 4 if needs_scratch else 0))
        if need <= budget:
            return t
    return 256


# ----------------------------------------------------------------------------
# Kernel bodies
# ----------------------------------------------------------------------------
def _dense_kernel_inplace(x_ref, w_ref, b_ref, o_ref, *, mxu_dtype, apply_relu):
    """K-reduction accumulates directly into the resident f32 output block."""
    k = pl.program_id(2)

    @pl.when(k == 0)
    def _init():
        o_ref[...] = jnp.zeros_like(o_ref)

    # Operands cast to the MXU dtype in-register (hidden under the MXU).
    o_ref[...] += jnp.dot(
        x_ref[...].astype(mxu_dtype),
        w_ref[...].astype(mxu_dtype),
        preferred_element_type=jnp.float32,
    )

    @pl.when(k == pl.num_programs(2) - 1)
    def _finalize():
        y = o_ref[...] + b_ref[...].astype(jnp.float32)
        if apply_relu:
            y = jnp.maximum(y, 0.0)
        o_ref[...] = y


def _dense_kernel_scratch(x_ref, w_ref, b_ref, o_ref, acc_ref, *, mxu_dtype,
                          apply_relu):
    """f32 accumulation in VMEM scratch; used only for narrow output dtypes."""
    k = pl.program_id(2)

    @pl.when(k == 0)
    def _init():
        acc_ref[...] = jnp.zeros_like(acc_ref)

    acc_ref[...] += jnp.dot(
        x_ref[...].astype(mxu_dtype),
        w_ref[...].astype(mxu_dtype),
        preferred_element_type=jnp.float32,
    )

    @pl.when(k == pl.num_programs(2) - 1)
    def _finalize():
        y = acc_ref[...] + b_ref[...].astype(jnp.float32)
        if apply_relu:
            y = jnp.maximum(y, 0.0)
        o_ref[...] = y.astype(o_ref.dtype)


def _make_fused_stack_kernel(n_layers, mxu_dtype, activate_last):
    """One grid step applies the whole DenseLayer stack to a block of rows."""
    def kernel(*refs):
        x_ref = refs[0]
        o_ref = refs[-1]
        h = x_ref[...].astype(jnp.float32)
        for li in range(n_layers):
            w_ref = refs[1 + 2 * li]
            b_ref = refs[2 + 2 * li]
            h = jnp.dot(h.astype(mxu_dtype), w_ref[...].astype(mxu_dtype),
                        preferred_element_type=jnp.float32)
            h = h + b_ref[...].astype(jnp.float32)
            if activate_last or li + 1 < n_layers:
                h = jnp.maximum(h, 0.0)
        o_ref[...] = h.astype(o_ref.dtype)
    return kernel


# ----------------------------------------------------------------------------
# Wrappers
# ----------------------------------------------------------------------------
def dense_layer(x, weight_t, bias, *, tm=None, tn=None, tk=512,
                mxu_dtype=jnp.bfloat16, out_dtype=None, apply_relu=True):
    """y = ReLU(x @ weight_t + bias)   (== DenseLayer.forward).

    x:        (M, K)
    weight_t: (K, N)   (transpose of torch Linear.weight)
    bias:     (N,) or (1, N)
    mxu_dtype: operand dtype fed to the MXU (bf16 by default; pass jnp.float32
               for full-precision matmul).  Accumulation is always f32.
    """
    M, K = x.shape
    Kw, N = weight_t.shape
    assert K == Kw, "weight_t must be (in_dim, out_dim)"
    out_dtype = jnp.dtype(out_dtype if out_dtype is not None else x.dtype)
    bias = jnp.asarray(bias).reshape(1, -1)
    assert bias.shape[1] == N

    in_elt = jnp.dtype(x.dtype).itemsize
    w_elt = jnp.dtype(weight_t.dtype).itemsize
    out_elt = out_dtype.itemsize
    use_scratch = out_dtype != jnp.dtype(jnp.float32)

    cap = _vmem_capacity_bytes()
    if tm is None or tn is None:
        t = _auto_square_tile(K, tk, in_elt, w_elt, out_elt, use_scratch, cap)
        tm = t if tm is None else tm
        tn = t if tn is None else tn

    tm_eff, Mp = _effective_tile(M, tm, 8)      # f32 sublane packing
    tn_eff, Np = _effective_tile(N, tn, 128)    # lane-dense output
    tk_eff, Kp = _effective_tile(K, tk, 128)

    # Zero-pad only dims that are actually tiled & ragged (exact for the matmul;
    # padded rows/cols are sliced off afterwards).  No dtype-cast pre-pass.
    xp = x if (Mp == M and Kp == K) else jnp.pad(x, ((0, Mp - M), (0, Kp - K)))
    wp = weight_t if (Kp == K and Np == N) else jnp.pad(
        weight_t, ((0, Kp - K), (0, Np - N)))
    bp = bias if Np == N else jnp.pad(bias, ((0, 0), (0, Np - N)))

    gm, gn, gk = Mp // tm_eff, Np // tn_eff, Kp // tk_eff
    grid = (gm, gn, gk)

    need = (2 * tm_eff * tk_eff * in_elt
            + 2 * tk_eff * tn_eff * w_elt
            + 2 * 8 * tn_eff * 4                      # bias tile (8-sublane pad)
            + 2 * tm_eff * tn_eff * out_elt
            + (tm_eff * tn_eff * 4 if use_scratch else 0))
    vmem_limit = int(min(max(2 * need, 32 << 20), cap - (2 << 20)))

    cost = pl.CostEstimate(
        flops=int(2 * M * K * N),
        transcendentals=0,
        bytes_accessed=int(M * K * in_elt * gn        # x re-read per N tile
                           + K * N * w_elt * gm       # w re-read per M tile
                           + N * 4 * gm
                           + M * N * out_elt),
    )

    if use_scratch:
        kernel = functools.partial(_dense_kernel_scratch,
                                   mxu_dtype=mxu_dtype, apply_relu=apply_relu)
        scratch = [pltpu.VMEM((tm_eff, tn_eff), jnp.float32)]
    else:
        kernel = functools.partial(_dense_kernel_inplace,
                                   mxu_dtype=mxu_dtype, apply_relu=apply_relu)
        scratch = []

    yp = pl.pallas_call(
        kernel,
        out_shape=jax.ShapeDtypeStruct((Mp, Np), out_dtype),
        grid_spec=pltpu.PrefetchScalarGridSpec(
            num_scalar_prefetch=0,
            grid=grid,
            in_specs=[
                pl.BlockSpec((tm_eff, tk_eff), lambda i, j, k: (i, k)),
                pl.BlockSpec((tk_eff, tn_eff), lambda i, j, k: (k, j)),
                pl.BlockSpec((1, tn_eff), lambda i, j, k: (0, j)),
            ],
            out_specs=pl.BlockSpec((tm_eff, tn_eff), lambda i, j, k: (i, j)),
            scratch_shapes=scratch,
        ),
        compiler_params=pltpu.CompilerParams(
            dimension_semantics=("parallel", "parallel", "arbitrary"),
            vmem_limit_bytes=vmem_limit,
        ),
        cost_estimate=cost,
    )(xp, wp, bp)

    return yp if (Mp == M and Np == N) else yp[:M, :N]


def fused_dense_relu_stack(x, layers, *, tm=256, mxu_dtype=jnp.bfloat16,
                           out_dtype=None, activate_last=True):
    """Applies a whole stack of DenseLayers (Linear + bias + ReLU) in ONE
    pallas_call, tiled over rows only; intermediates never leave VMEM.

    x:      (M, K0)   per-node / per-edge features
    layers: sequence of (weight_t (K_i, N_i), bias (N_i,) or None), chained.
    """
    M, K0 = x.shape
    out_dtype = jnp.dtype(out_dtype if out_dtype is not None else x.dtype)

    tm_eff, Mp = _effective_tile(M, tm, 8)
    xp = x if Mp == M else jnp.pad(x, ((0, Mp - M), (0, 0)))
    grid_m = Mp // tm_eff

    in_specs = [pl.BlockSpec((tm_eff, K0), lambda i: (i, 0))]
    args = [xp]
    prev, flops, w_bytes, max_feat = K0, 0, 0, K0
    for (w, b) in layers:
        Kw, Nw = w.shape
        assert Kw == prev, "layer dims must chain"
        prev = Nw
        max_feat = max(max_feat, Nw)
        bb = (jnp.zeros((1, Nw), dtype=jnp.float32) if b is None
              else jnp.asarray(b).reshape(1, -1))
        in_specs.append(pl.BlockSpec((Kw, Nw), lambda i: (0, 0)))   # whole weight
        in_specs.append(pl.BlockSpec((1, Nw), lambda i: (0, 0)))    # whole bias
        args.extend([w, bb])
        flops += 2 * M * Kw * Nw
        w_bytes += Kw * Nw * jnp.dtype(w.dtype).itemsize + Nw * 4
    Nout = prev

    cap = _vmem_capacity_bytes()
    need = (2 * tm_eff * K0 * jnp.dtype(x.dtype).itemsize
            + 2 * w_bytes
            + 2 * tm_eff * Nout * out_dtype.itemsize
            + 4 * tm_eff * max_feat * 4)              # live f32 intermediates
    vmem_limit = int(min(max(2 * need, 32 << 20), cap - (2 << 20)))

    cost = pl.CostEstimate(
        flops=int(flops),
        transcendentals=0,
        bytes_accessed=int(M * K0 * jnp.dtype(x.dtype).itemsize
                           + w_bytes * grid_m
                           + M * Nout * out_dtype.itemsize),
    )

    kernel = _make_fused_stack_kernel(len(layers), mxu_dtype, activate_last)

    yp = pl.pallas_call(
        kernel,
        out_shape=jax.ShapeDtypeStruct((Mp, Nout), out_dtype),
        grid_spec=pltpu.PrefetchScalarGridSpec(
            num_scalar_prefetch=0,
            grid=(grid_m,),
            in_specs=in_specs,
            out_specs=pl.BlockSpec((tm_eff, Nout), lambda i: (i, 0)),
        ),
        compiler_params=pltpu.CompilerParams(
            dimension_semantics=("parallel",),   # >=2 row blocks -> both v7x TCs
            vmem_limit_bytes=vmem_limit,
        ),
        cost_estimate=cost,
    )(*args)

    return yp if Mp == M else yp[:M]


# ----------------------------------------------------------------------------
# Self-test
# ----------------------------------------------------------------------------
if __name__ == "__main__":
    key = jax.random.PRNGKey(0)

    # ---- 1. Fused per-edge MLP: the angle DenseLayer stack from Bond2BondLayer
    #         (Angle2embedding.angle_input_layer -> angle2 -> angle1), hidden=32,
    #         over a small batch of angle triplets.  Grid = 2 parallel row blocks.
    n_edges, hidden = 256, 32
    ks = jax.random.split(key, 8)
    bound = 1.0 / jnp.sqrt(jnp.float32(hidden))
    x = jax.random.normal(ks[0], (n_edges, hidden), dtype=jnp.float32)
    layers = []
    for li in range(3):
        w = jax.random.uniform(ks[1 + 2 * li], (hidden, hidden), jnp.float32,
                               minval=-bound, maxval=bound)
        b = jax.random.uniform(ks[2 + 2 * li], (hidden,), jnp.float32,
                               minval=-bound, maxval=bound)
        layers.append((w, b))

    out = jax.block_until_ready(fused_dense_relu_stack(x, layers, tm=128))
    assert out.shape == (n_edges, hidden)

    def ref_stack(h, layers, cast):
        for w, b in layers:
            if cast:  # same bf16-operand / f32-accumulate contract as the kernel
                h = jnp.dot(h.astype(jnp.bfloat16), w.astype(jnp.bfloat16),
                            preferred_element_type=jnp.float32)
            else:
                h = h @ w
            h = jnp.maximum(h + b.reshape(1, -1), 0.0)
        return h

    ref_b = ref_stack(x, layers, cast=True)
    ref_f = ref_stack(x, layers, cast=False)
    assert jnp.allclose(out, ref_b, atol=1e-4, rtol=1e-4), "fused stack mismatch"
    assert jnp.allclose(out, ref_f, atol=5e-2, rtol=5e-2), "fused stack far from f32"

    # ---- 2. Single DenseLayer at the actual Bind shapes (batch=8, dim=32):
    #         single-block path, no padding, no pre-pass, no output slice.
    N1, in_dim, out_dim = 8, 32, 32
    k2 = jax.random.split(jax.random.PRNGKey(1), 3)
    bnd = 1.0 / jnp.sqrt(jnp.float32(in_dim))
    x1 = jax.random.normal(k2[0], (N1, in_dim), dtype=jnp.float32)
    w1 = jax.random.uniform(k2[1], (in_dim, out_dim), jnp.float32,
                            minval=-bnd, maxval=bnd)
    b1 = jax.random.uniform(k2[2], (1, out_dim), jnp.float32,
                            minval=-bnd, maxval=bnd)

    out1 = jax.block_until_ready(dense_layer(x1, w1, b1))
    ref1b = jnp.maximum(
        jnp.dot(x1.astype(jnp.bfloat16), w1.astype(jnp.bfloat16),
                preferred_element_type=jnp.float32) + b1, 0.0)
    ref1f = jnp.maximum(x1 @ w1 + b1, 0.0)
    assert out1.shape == (N1, out_dim)
    assert jnp.allclose(out1, ref1b, atol=1e-4, rtol=1e-4), "dense mismatch"
    assert jnp.allclose(out1, ref1f, atol=3e-2, rtol=3e-2), "dense far from f32"

    # bf16 output path (exercises the scratch-accumulator branch).
    out1h = jax.block_until_ready(dense_layer(x1, w1, b1, out_dtype=jnp.bfloat16))
    assert out1h.dtype == jnp.bfloat16
    assert jnp.allclose(out1h.astype(jnp.float32), ref1b, atol=2e-2, rtol=2e-2)

    # ---- 3. Non-aligned shapes exercising the (M, N, K) multi-tile grid,
    #         padding, and the in-place K accumulation / epilogue path.
    M3, K3, N3 = 300, 160, 200
    k3 = jax.random.split(jax.random.PRNGKey(2), 3)
    x3 = jax.random.normal(k3[0], (M3, K3), dtype=jnp.float32)
    w3 = jax.random.normal(k3[1], (K3, N3), dtype=jnp.float32) * 0.05
    b3 = jax.random.normal(k3[2], (1, N3), dtype=jnp.float32) * 0.05

    out3 = jax.block_until_ready(dense_layer(x3, w3, b3, tm=128, tn=128, tk=128))
    ref3 = jnp.maximum(
        jnp.dot(x3.astype(jnp.bfloat16), w3.astype(jnp.bfloat16),
                preferred_element_type=jnp.float32) + b3, 0.0)
    assert out3.shape == (M3, N3)
    assert jnp.allclose(out3, ref3, atol=1e-4, rtol=1e-4), "tiled path mismatch"

    print("KERNEL_OK")
</pallas_src>

<mosaic_0001>
module attributes {stable_mosaic.version = 11 : i64} {
  func.func @kernel(%arg0: i32, %arg1: memref<128x32xf32, #tpu.memory_space<vmem>>, %arg2: memref<32x32xf32, #tpu.memory_space<vmem>>, %arg3: memref<1x32xf32, #tpu.memory_space<vmem>>, %arg4: memref<32x32xf32, #tpu.memory_space<vmem>>, %arg5: memref<1x32xf32, #tpu.memory_space<vmem>>, %arg6: memref<32x32xf32, #tpu.memory_space<vmem>>, %arg7: memref<1x32xf32, #tpu.memory_space<vmem>>, %arg8: memref<128x32xf32, #tpu.memory_space<vmem>>) attributes {dimension_semantics = [#tpu.dimension_semantics<parallel>], iteration_bounds = array<i64: 2>, scalar_prefetch = 0 : i64, scratch_operands = 0 : i64, tpu.core_type = #tpu.core_type<tc>, window_params = [{transform_indices = @transform_0, window_bounds = array<i64: 128, 32>}, {pipeline_mode = #tpu.pipeline_mode<synchronous>, transform_indices = @transform_1, window_bounds = array<i64: 32, 32>}, {pipeline_mode = #tpu.pipeline_mode<synchronous>, transform_indices = @transform_2, window_bounds = array<i64: 1, 32>}, {pipeline_mode = #tpu.pipeline_mode<synchronous>, transform_indices = @transform_3, window_bounds = array<i64: 32, 32>}, {pipeline_mode = #tpu.pipeline_mode<synchronous>, transform_indices = @transform_4, window_bounds = array<i64: 1, 32>}, {pipeline_mode = #tpu.pipeline_mode<synchronous>, transform_indices = @transform_5, window_bounds = array<i64: 32, 32>}, {pipeline_mode = #tpu.pipeline_mode<synchronous>, transform_indices = @transform_6, window_bounds = array<i64: 1, 32>}, {transform_indices = @transform_7, window_bounds = array<i64: 128, 32>}]} {
    %c0 = arith.constant 0 : index
    %c0_0 = arith.constant 0 : index
    %0 = vector.load %arg1[%c0, %c0_0] : memref<128x32xf32, #tpu.memory_space<vmem>>, vector<128x32xf32>
    %1 = arith.truncf %0 : vector<128x32xf32> to vector<128x32xbf16>
    %c0_1 = arith.constant 0 : index
    %c0_2 = arith.constant 0 : index
    %2 = vector.load %arg2[%c0_1, %c0_2] : memref<32x32xf32, #tpu.memory_space<vmem>>, vector<32x32xf32>
    %3 = arith.truncf %2 : vector<32x32xf32> to vector<32x32xbf16>
    %cst = arith.constant dense<0.000000e+00> : vector<128x32xf32>
    %4 = tpu.matmul %1, %3, %cst {dimension_numbers = #tpu.dot_dimension_numbers<[1], [0], [0], [1], [0, 0, 1, 1], [], []>} : vector<128x32xbf16>, vector<32x32xbf16>, vector<128x32xf32> -> vector<128x32xf32>
    %c0_3 = arith.constant 0 : index
    %c0_4 = arith.constant 0 : index
    %5 = vector.load %arg3[%c0_3, %c0_4] : memref<1x32xf32, #tpu.memory_space<vmem>>, vector<1x32xf32>
    %6 = vector.broadcast %5 : vector<1x32xf32> to vector<128x32xf32>
    %7 = arith.addf %4, %6 : vector<128x32xf32>
    %cst_5 = arith.constant 0.000000e+00 : f32
    %8 = vector.broadcast %cst_5 : f32 to vector<128x32xf32>
    %9 = arith.maximumf %7, %8 : vector<128x32xf32>
    %10 = arith.truncf %9 : vector<128x32xf32> to vector<128x32xbf16>
    %c0_6 = arith.constant 0 : index
    %c0_7 = arith.constant 0 : index
    %11 = vector.load %arg4[%c0_6, %c0_7] : memref<32x32xf32, #tpu.memory_space<vmem>>, vector<32x32xf32>
    %12 = arith.truncf %11 : vector<32x32xf32> to vector<32x32xbf16>
    %cst_8 = arith.constant dense<0.000000e+00> : vector<128x32xf32>
    %13 = tpu.matmul %10, %12, %cst_8 {dimension_numbers = #tpu.dot_dimension_numbers<[1], [0], [0], [1], [0, 0, 1, 1], [], []>} : vector<128x32xbf16>, vector<32x32xbf16>, vector<128x32xf32> -> vector<128x32xf32>
    %c0_9 = arith.constant 0 : index
    %c0_10 = arith.constant 0 : index
    %14 = vector.load %arg5[%c0_9, %c0_10] : memref<1x32xf32, #tpu.memory_space<vmem>>, vector<1x32xf32>
    %15 = vector.broadcast %14 : vector<1x32xf32> to vector<128x32xf32>
    %16 = arith.addf %13, %15 : vector<128x32xf32>
    %cst_11 = arith.constant 0.000000e+00 : f32
    %17 = vector.broadcast %cst_11 : f32 to vector<128x32xf32>
    %18 = arith.maximumf %16, %17 : vector<128x32xf32>
    %19 = arith.truncf %18 : vector<128x32xf32> to vector<128x32xbf16>
    %c0_12 = arith.constant 0 : index
    %c0_13 = arith.constant 0 : index
    %20 = vector.load %arg6[%c0_12, %c0_13] : memref<32x32xf32, #tpu.memory_space<vmem>>, vector<32x32xf32>
    %21 = arith.truncf %20 : vector<32x32xf32> to vector<32x32xbf16>
    %cst_14 = arith.constant dense<0.000000e+00> : vector<128x32xf32>
    %22 = tpu.matmul %19, %21, %cst_14 {dimension_numbers = #tpu.dot_dimension_numbers<[1], [0], [0], [1], [0, 0, 1, 1], [], []>} : vector<128x32xbf16>, vector<32x32xbf16>, vector<128x32xf32> -> vector<128x32xf32>
    %c0_15 = arith.constant 0 : index
    %c0_16 = arith.constant 0 : index
    %23 = vector.load %arg7[%c0_15, %c0_16] : memref<1x32xf32, #tpu.memory_space<vmem>>, vector<1x32xf32>
    %24 = vector.broadcast %23 : vector<1x32xf32> to vector<128x32xf32>
    %25 = arith.addf %22, %24 : vector<128x32xf32>
    %cst_17 = arith.constant 0.000000e+00 : f32
    %26 = vector.broadcast %cst_17 : f32 to vector<128x32xf32>
    %27 = arith.maximumf %25, %26 : vector<128x32xf32>
    %c0_18 = arith.constant 0 : index
    %c0_19 = arith.constant 0 : index
    %28 = vector.load %arg8[%c0_18, %c0_19] : memref<128x32xf32, #tpu.memory_space<vmem>>, vector<128x32xf32>
    tpu.vector_store %arg8[%c0_18, %c0_19], %27 {strides = array<i32>} : memref<128x32xf32, #tpu.memory_space<vmem>>, vector<128x32xf32>,
    return
  }
  func.func @transform_0(%arg0: i32) -> (i32, i32) {
    %c0_i32 = arith.constant 0 : i32
    %c0_i32_0 = arith.constant 0 : i32
    return %arg0, %c0_i32 : i32, i32
  }
  func.func @transform_1(%arg0: i32) -> (i32, i32) {
    %c0_i32 = arith.constant 0 : i32
    %c0_i32_0 = arith.constant 0 : i32
    %c0_i32_1 = arith.constant 0 : i32
    return %c0_i32, %c0_i32_0 : i32, i32
  }
  func.func @transform_2(%arg0: i32) -> (i32, i32) {
    %c0_i32 = arith.constant 0 : i32
    %c0_i32_0 = arith.constant 0 : i32
    %c0_i32_1 = arith.constant 0 : i32
    return %c0_i32, %c0_i32_0 : i32, i32
  }
  func.func @transform_3(%arg0: i32) -> (i32, i32) {
    %c0_i32 = arith.constant 0 : i32
    %c0_i32_0 = arith.constant 0 : i32
    %c0_i32_1 = arith.constant 0 : i32
    return %c0_i32, %c0_i32_0 : i32, i32
  }
  func.func @transform_4(%arg0: i32) -> (i32, i32) {
    %c0_i32 = arith.constant 0 : i32
    %c0_i32_0 = arith.constant 0 : i32
    %c0_i32_1 = arith.constant 0 : i32
    return %c0_i32, %c0_i32_0 : i32, i32
  }
  func.func @transform_5(%arg0: i32) -> (i32, i32) {
    %c0_i32 = arith.constant 0 : i32
    %c0_i32_0 = arith.constant 0 : i32
    %c0_i32_1 = arith.constant 0 : i32
    return %c0_i32, %c0_i32_0 : i32, i32
  }
  func.func @transform_6(%arg0: i32) -> (i32, i32) {
    %c0_i32 = arith.constant 0 : i32
    %c0_i32_0 = arith.constant 0 : i32
    %c0_i32_1 = arith.constant 0 : i32
    return %c0_i32, %c0_i32_0 : i32, i32
  }
  func.func @transform_7(%arg0: i32) -> (i32, i32) {
    %c0_i32 = arith.constant 0 : i32
    %c0_i32_0 = arith.constant 0 : i32
    return %arg0, %c0_i32 : i32, i32
  }
}

</mosaic_0001>

<llo_original>
// kernel: tpu_custom_call.1
$region0: #{tpu_custom_call.1}
  #allocation0 [shape = 'u32[]', space=smem, size = 0x4, offset = 0x4, fixed_abs, tag = 'smem constant byte address 0x4 - core index']
  #allocation1 [shape = 'u32[144,128]{1,0:T(1,128)}', space=vmem, size = 0x12000, scoped, tag = 'internal scratch']
  %s0 = inlined_call_operand.vmem [shape: f32[256,32], index: 0, kind: input, shape index: {}]
  %s1 = inlined_call_operand.vmem [shape: f32[32,32], index: 1, kind: input, shape index: {}]
  %s2 = inlined_call_operand.vmem [shape: f32[1,32], index: 2, kind: input, shape index: {}]
  %s3 = inlined_call_operand.vmem [shape: f32[32,32], index: 3, kind: input, shape index: {}]
  %s4 = inlined_call_operand.vmem [shape: f32[1,32], index: 4, kind: input, shape index: {}]
  %s5 = inlined_call_operand.vmem [shape: f32[32,32], index: 5, kind: input, shape index: {}]
  %s6 = inlined_call_operand.vmem [shape: f32[1,32], index: 6, kind: input, shape index: {}]
  %s7 = inlined_call_operand.vmem [shape: f32[256,32], index: 7, kind: output, shape index: {}]
  %s8 = sld [smem:[#allocation0]]
  $region61: #{tpu_custom_call.1} parent=0
    _
  %s10 = ssub.s32 1, %s8
  %s11 = scalar_select 0, %s10, %s8
  loop: start=0, step=1, limit=4
  $region2: #{tpu_custom_call.1} parent=0 // loop_pre_header
    _
  $region3: #{tpu_custom_call.1} parent=0 // loop_header
    %s13 = sphi 0, %s17
    %p14 = scmp.ge.s32.totalorder %s13, 4
    %s23 = sphi 0, %s25
    %s26 = sphi 0, %s23
    %s27 = sphi 0, %s26
    %s43 = sphi 0, %s27
    %s47 = sphi 0, %s47
    %s49 = sphi 0, %s47
    %s50 = sphi 0, %s49
    %s64 = sphi 0, %s50
    %s68 = sphi 0, %s68
    %s70 = sphi 0, %s68
    %s71 = sphi 0, %s70
    %s85 = sphi 0, %s71
    %s89 = sphi 0, %s89
    %s91 = sphi 0, %s89
    %s92 = sphi 0, %s91
    %s106 = sphi 0, %s92
    %s110 = sphi 0, %s110
    %s112 = sphi 0, %s110
    %s113 = sphi 0, %s112
    %s127 = sphi 0, %s113
    %s131 = sphi 0, %s131
    %s133 = sphi 0, %s131
    %s134 = sphi 0, %s133
    %s148 = sphi 0, %s134
    %s152 = sphi 0, %s152
    %s154 = sphi 0, %s152
    %s155 = sphi 0, %s154
    %s169 = sphi 0, %s155
    %s175 = sphi 0, %s177
    %s178 = sphi 0, %s175
    %s179 = sphi 0, %s178
    %s195 = sphi 0, %s179
  $region4: #{tpu_custom_call.1} parent=0 // loop_header_branch
    %16 = sbr.rel (%p14) target = $region8
  $region5: #{tpu_custom_call.1} parent=0 // loop_body
    %s18 = ssub.s32 %s13, 1
    %s19 = ssub.s32 %s13, 2
    %s20 = sadd.s32 %s13, 1
    %s21 = ssub.s32 %s13, %s20
    %p22 = scmp.eq.s32.totalorder %s21, 0
    %s24 = sadd.s32 %s23, 1
    %s25 = scalar_select %p22, %s23, %s24
    %p28 = pneg %p22
    %p29 = scmp.eq.s32.totalorder %s13, 1
    %p30 = por %p28, %p29
    %p31 = scmp.ne.s32.totalorder %s23, %s26
    %p32 = scmp.eq.s32.totalorder %s13, 0
    %p33 = por %p31, %p32
    %p34 = scmp.ne.s32.totalorder %s23, %s26
    %p35 = scmp.eq.s32.totalorder %s18, 1
    %p36 = por %p34, %p35
    %p37 = scmp.ne.s32.totalorder %s26, %s27
    %p38 = scmp.eq.s32.totalorder %s18, 0
    %p39 = por %p37, %p38
    %p40 = scmp.ne.s32.totalorder %s26, %s27
    %p41 = scmp.eq.s32.totalorder %s19, 1
    %p42 = por %p40, %p41
    %p44 = scmp.ne.s32.totalorder %s27, %s43
    %p45 = scmp.eq.s32.totalorder %s19, 0
    %p46 = por %p44, %p45
    %s48 = sadd.s32 %s47, 1
    %p51 = scmp.eq.s32.totalorder %s13, 1
    %p52 = scmp.ne.s32.totalorder %s47, %s49
    %p53 = scmp.eq.s32.totalorder %s13, 0
    %p54 = por %p52, %p53
    %p55 = scmp.ne.s32.totalorder %s47, %s49
    %p56 = scmp.eq.s32.totalorder %s18, 1
    %p57 = por %p55, %p56
    %p58 = scmp.ne.s32.totalorder %s49, %s50
    %p59 = scmp.eq.s32.totalorder %s18, 0
    %p60 = por %p58, %p59
    %p61 = scmp.ne.s32.totalorder %s49, %s50
    %p62 = scmp.eq.s32.totalorder %s19, 1
    %p63 = por %p61, %p62
    %p65 = scmp.ne.s32.totalorder %s50, %s64
    %p66 = scmp.eq.s32.totalorder %s19, 0
    %p67 = por %p65, %p66
    %s69 = sadd.s32 %s68, 1
    %p72 = scmp.eq.s32.totalorder %s13, 1
    %p73 = scmp.ne.s32.totalorder %s68, %s70
    %p74 = scmp.eq.s32.totalorder %s13, 0
    %p75 = por %p73, %p74
    %p76 = scmp.ne.s32.totalorder %s68, %s70
    %p77 = scmp.eq.s32.totalorder %s18, 1
    %p78 = por %p76, %p77
    %p79 = scmp.ne.s32.totalorder %s70, %s71
    %p80 = scmp.eq.s32.totalorder %s18, 0
    %p81 = por %p79, %p80
    %p82 = scmp.ne.s32.totalorder %s70, %s71
    %p83 = scmp.eq.s32.totalorder %s19, 1
    %p84 = por %p82, %p83
    %p86 = scmp.ne.s32.totalorder %s71, %s85
    %p87 = scmp.eq.s32.totalorder %s19, 0
    %p88 = por %p86, %p87
    %s90 = sadd.s32 %s89, 1
    %p93 = scmp.eq.s32.totalorder %s13, 1
    %p94 = scmp.ne.s32.totalorder %s89, %s91
    %p95 = scmp.eq.s32.totalorder %s13, 0
    %p96 = por %p94, %p95
    %p97 = scmp.ne.s32.totalorder %s89, %s91
    %p98 = scmp.eq.s32.totalorder %s18, 1
    %p99 = por %p97, %p98
    %p100 = scmp.ne.s32.totalorder %s91, %s92
    %p101 = scmp.eq.s32.totalorder %s18, 0
    %p102 = por %p100, %p101
    %p103 = scmp.ne.s32.totalorder %s91, %s92
    %p104 = scmp.eq.s32.totalorder %s19, 1
    %p105 = por %p103, %p104
    %p107 = scmp.ne.s32.totalorder %s92, %s106
    %p108 = scmp.eq.s32.totalorder %s19, 0
    %p109 = por %p107, %p108
    %s111 = sadd.s32 %s110, 1
    %p114 = scmp.eq.s32.totalorder %s13, 1
    %p115 = scmp.ne.s32.totalorder %s110, %s112
    %p116 = scmp.eq.s32.totalorder %s13, 0
    %p117 = por %p115, %p116
    %p118 = scmp.ne.s32.totalorder %s110, %s112
    %p119 = scmp.eq.s32.totalorder %s18, 1
    %p120 = por %p118, %p119
    %p121 = scmp.ne.s32.totalorder %s112, %s113
    %p122 = scmp.eq.s32.totalorder %s18, 0
    %p123 = por %p121, %p122
    %p124 = scmp.ne.s32.totalorder %s112, %s113
    %p125 = scmp.eq.s32.totalorder %s19, 1
    %p126 = por %p124, %p125
    %p128 = scmp.ne.s32.totalorder %s113, %s127
    %p129 = scmp.eq.s32.totalorder %s19, 0
    %p130 = por %p128, %p129
    %s132 = sadd.s32 %s131, 1
    %p135 = scmp.eq.s32.totalorder %s13, 1
    %p136 = scmp.ne.s32.totalorder %s131, %s133
    %p137 = scmp.eq.s32.totalorder %s13, 0
    %p138 = por %p136, %p137
    %p139 = scmp.ne.s32.totalorder %s131, %s133
    %p140 = scmp.eq.s32.totalorder %s18, 1
    %p141 = por %p139, %p140
    %p142 = scmp.ne.s32.totalorder %s133, %s134
    %p143 = scmp.eq.s32.totalorder %s18, 0
    %p144 = por %p142, %p143
    %p145 = scmp.ne.s32.totalorder %s133, %s134
    %p146 = scmp.eq.s32.totalorder %s19, 1
    %p147 = por %p145, %p146
    %p149 = scmp.ne.s32.totalorder %s134, %s148
    %p150 = scmp.eq.s32.totalorder %s19, 0
    %p151 = por %p149, %p150
    %s153 = sadd.s32 %s152, 1
    %p156 = scmp.eq.s32.totalorder %s13, 1
    %p157 = scmp.ne.s32.totalorder %s152, %s154
    %p158 = scmp.eq.s32.totalorder %s13, 0
    %p159 = por %p157, %p158
    %p160 = scmp.ne.s32.totalorder %s152, %s154
    %p161 = scmp.eq.s32.totalorder %s18, 1
    %p162 = por %p160, %p161
    %p163 = scmp.ne.s32.totalorder %s154, %s155
    %p164 = scmp.eq.s32.totalorder %s18, 0
    %p165 = por %p163, %p164
    %p166 = scmp.ne.s32.totalorder %s154, %s155
    %p167 = scmp.eq.s32.totalorder %s19, 1
    %p168 = por %p166, %p167
    %p170 = scmp.ne.s32.totalorder %s155, %s169
    %p171 = scmp.eq.s32.totalorder %s19, 0
    %p172 = por %p170, %p171
    %s173 = ssub.s32 %s13, %s20
    %p174 = scmp.eq.s32.totalorder %s173, 0
    %s176 = sadd.s32 %s175, 1
    %s177 = scalar_select %p174, %s175, %s176
    %p180 = pneg %p174
    %p181 = scmp.eq.s32.totalorder %s13, 1
    %p182 = por %p180, %p181
    %p183 = scmp.ne.s32.totalorder %s175, %s178
    %p184 = scmp.eq.s32.totalorder %s13, 0
    %p185 = por %p183, %p184
    %p186 = scmp.ne.s32.totalorder %s175, %s178
    %p187 = scmp.eq.s32.totalorder %s18, 1
    %p188 = por %p186, %p187
    %p189 = scmp.ne.s32.totalorder %s178, %s179
    %p190 = scmp.eq.s32.totalorder %s18, 0
    %p191 = por %p189, %p190
    %p192 = scmp.ne.s32.totalorder %s178, %s179
    %p193 = scmp.eq.s32.totalorder %s19, 1
    %p194 = por %p192, %p193
    %p196 = scmp.ne.s32.totalorder %s179, %s195
    %p197 = scmp.eq.s32.totalorder %s19, 0
    %p198 = por %p196, %p197
    %p199 = scmp.le.s32.totalorder 1, %s13
    %p200 = scmp.lt.s32.totalorder %s13, 3
    %p201 = pnand %p199, %p200
    %p202 = pneg %p201
    // Predicated region
    $region9: #{tpu_custom_call.1} parent=5 // pred_check
      _
    $region10: #{tpu_custom_call.1} parent=5 // pred_check_branch
      %204 = sbr.rel (%p201) target = $region12
    $region11: #{tpu_custom_call.1} parent=5 // pred_region
      %s205 = ssub.s32 %s13, 1
      // Predicated region
      $region13: #{tpu_custom_call.1} parent=11 // pred_check
        %p206 = pneg %p60
      $region14: #{tpu_custom_call.1} parent=11 // pred_check_branch
        %208 = sbr.rel (%p206) target = $region16
      $region15: #{tpu_custom_call.1} parent=11 // pred_region
        _
      $region16: #{tpu_custom_call.1} parent=11 // pred_fallthru
        _
      // Predicated region
      $region17: #{tpu_custom_call.1} parent=11 // pred_check
        %p209 = pneg %p81
      $region18: #{tpu_custom_call.1} parent=11 // pred_check_branch
        %211 = sbr.rel (%p209) target = $region20
      $region19: #{tpu_custom_call.1} parent=11 // pred_region
        _
      $region20: #{tpu_custom_call.1} parent=11 // pred_fallthru
        _
      // Predicated region
      $region21: #{tpu_custom_call.1} parent=11 // pred_check
        %p212 = pneg %p102
      $region22: #{tpu_custom_call.1} parent=11 // pred_check_branch
        %214 = sbr.rel (%p212) target = $region24
      $region23: #{tpu_custom_call.1} parent=11 // pred_region
        _
      $region24: #{tpu_custom_call.1} parent=11 // pred_fallthru
        _
      // Predicated region
      $region25: #{tpu_custom_call.1} parent=11 // pred_check
        %p215 = pneg %p123
      $region26: #{tpu_custom_call.1} parent=11 // pred_check_branch
        %217 = sbr.rel (%p215) target = $region28
      $region27: #{tpu_custom_call.1} parent=11 // pred_region
        _
      $region28: #{tpu_custom_call.1} parent=11 // pred_fallthru
        _
      // Predicated region
      $region29: #{tpu_custom_call.1} parent=11 // pred_check
        %p218 = pneg %p144
      $region30: #{tpu_custom_call.1} parent=11 // pred_check_branch
        %220 = sbr.rel (%p218) target = $region32
      $region31: #{tpu_custom_call.1} parent=11 // pred_region
        _
      $region32: #{tpu_custom_call.1} parent=11 // pred_fallthru
        _
      // Predicated region
      $region33: #{tpu_custom_call.1} parent=11 // pred_check
        %p221 = pneg %p165
      $region34: #{tpu_custom_call.1} parent=11 // pred_check_branch
        %223 = sbr.rel (%p221) target = $region36
      $region35: #{tpu_custom_call.1} parent=11 // pred_region
        _
      $region36: #{tpu_custom_call.1} parent=11 // pred_fallthru
        _
    $region12: #{tpu_custom_call.1} parent=5 // pred_fallthru
      _
    %p224 = scmp.lt.s32.totalorder %s13, 2
    // Predicated region
    $region37: #{tpu_custom_call.1} parent=5 // pred_check
      %p225 = pneg %p224
    $region38: #{tpu_custom_call.1} parent=5 // pred_check_branch
      %227 = sbr.rel (%p225) target = $region40
    $region39: #{tpu_custom_call.1} parent=5 // pred_region
      // Predicated region
      $region41: #{tpu_custom_call.1} parent=39 // pred_check
        %p228 = pneg %p33
      $region42: #{tpu_custom_call.1} parent=39 // pred_check_branch
        %230 = sbr.rel (%p228) target = $region44
      $region43: #{tpu_custom_call.1} parent=39 // pred_region
        %s231 = smul.u32 16, %s13
        %p232 = scmp.lt.s32.totalorder %s231, 31
        %s233 = scalar_select %p232, %s231, 31
        %s234 = smul.addr %s233, 8
        %s235 = scalar_lea.vmem %s0, %s234
        %s236 = smul.u32 16, %s13
      $region44: #{tpu_custom_call.1} parent=39 // pred_fallthru
        _
    $region40: #{tpu_custom_call.1} parent=5 // pred_fallthru
      _
    %p237 = scmp.le.s32.totalorder 1, %s13
    %p238 = scmp.lt.s32.totalorder %s13, 3
    %p239 = pnand %p237, %p238
    %p240 = pneg %p239
    // Predicated region
    $region45: #{tpu_custom_call.1} parent=5 // pred_check
      _
    $region46: #{tpu_custom_call.1} parent=5 // pred_check_branch
      %242 = sbr.rel (%p239) target = $region48
    $region47: #{tpu_custom_call.1} parent=5 // pred_region
      %s243 = ssub.s32 %s13, 1
      %s244 = smul.u32 16, %s18
      %p245 = scmp.lt.s32.totalorder %s244, 31
      %s246 = scalar_select %p245, %s244, 31
      %s247 = smul.addr %s246, 8
      %s248 = scalar_lea.vmem %s0, %s247
      %p249 = pneg %p39
      %p250 = pneg %p36
      %p251 = pneg %p60
      %p252 = pneg %p57
      %p253 = pneg %p81
      %p254 = pneg %p78
      %p255 = pneg %p102
      %p256 = pneg %p99
      %p257 = pneg %p123
      %p258 = pneg %p120
      %p259 = pneg %p144
      %p260 = pneg %p141
      %p261 = pneg %p165
      %p262 = pneg %p162
      %p263 = pneg %p191
      %p264 = pneg %p188
      %s265 = smul.u32 16, %s18
      %p266 = scmp.lt.s32.totalorder %s265, 31
      %s267 = scalar_select %p266, %s265, 31
      %s268 = smul.addr %s267, 8
      %s269 = scalar_lea.vmem %s7, %s268
      %s270 = smul.u32 16, %s18
      %p271 = scmp.lt.s32.totalorder %s270, 31
      %s272 = scalar_select %p271, %s270, 31
      %s273 = smul.addr %s272, 8
      %s274 = scalar_lea.vmem %s0, %s273
      %s275 = smul.u32 16, %s18
      %s276 = smul.u32 16, %s18
      %p277 = scmp.lt.s32.totalorder %s276, 31
      %s278 = scalar_select %p277, %s276, 31
      %s279 = smul.addr %s278, 8
      %s280 = scalar_lea.vmem %s7, %s279
      %s281 = smul.u32 16, %s18
      %v283 = vld [vmem:[%s274] sm:$0xff]
      %v284 = vld [vmem:[%s274 + $0x8] sm:$0xff]
      %v285 = vld [vmem:[%s274 + $0x10] sm:$0xff]
      %v286 = vld [vmem:[%s274 + $0x18] sm:$0xff]
      %v287 = vld [vmem:[%s274 + $0x20] sm:$0xff]
      %v288 = vld [vmem:[%s274 + $0x28] sm:$0xff]
      %v289 = vld [vmem:[%s274 + $0x30] sm:$0xff]
      %v290 = vld [vmem:[%s274 + $0x38] sm:$0xff]
      %v291 = vld [vmem:[%s274 + $0x40] sm:$0xff]
      %v292 = vld [vmem:[%s274 + $0x48] sm:$0xff]
      %v293 = vld [vmem:[%s274 + $0x50] sm:$0xff]
      %v294 = vld [vmem:[%s274 + $0x58] sm:$0xff]
      %v295 = vld [vmem:[%s274 + $0x60] sm:$0xff]
      %v296 = vld [vmem:[%s274 + $0x68] sm:$0xff]
      %v297 = vld [vmem:[%s274 + $0x70] sm:$0xff]
      %v298 = vld [vmem:[%s274 + $0x78] sm:$0xff]
      %v299 = vpack.c.bf16 %v284, %v283
      %v300 = vpack.c.bf16 %v286, %v285
      %v301 = vpack.c.bf16 %v288, %v287
      %v302 = vpack.c.bf16 %v290, %v289
      %v303 = vpack.c.bf16 %v292, %v291
      %v304 = vpack.c.bf16 %v294, %v293
      %v305 = vpack.c.bf16 %v296, %v295
      %v306 = vpack.c.bf16 %v298, %v297
      %v307 = vld [vmem:[%s1] sm:$0xff]
      %v308 = vld [vmem:[%s1 + $0x8] sm:$0xff]
      %v309 = vld [vmem:[%s1 + $0x10] sm:$0xff]
      %v310 = vld [vmem:[%s1 + $0x18] sm:$0xff]
      %v311 = vpack.c.bf16 %v308, %v307
      %v312 = vpack.c.bf16 %v310, %v309
      %v313 = vld [vmem:[%s2] sm:$0x1]
      %v315 = vlaneseq
      %v316 = vshrl.u32 %v315, 7
      %v317 = vsub.s32 0, %v316
      %v318 = vrot.slane %v313, %v317
      %vm320 = vcmask 261120
      %v322 = vsel %vm320, %v299, 0
      %v325 = vsel %vm320, %v300, 0
      %v328 = vsel %vm320, %v301, 0
      %v331 = vsel %vm320, %v302, 0
      %v334 = vsel %vm320, %v303, 0
      %v337 = vsel %vm320, %v304, 0
      %v340 = vsel %vm320, %v305, 0
      %v343 = vsel %vm320, %v306, 0
      %345 = vmatprep.subr.bf16.mxu0 0
      %346 = vmatpush1.bf16.msra.mxu0 0
      %347 = vmatprep.subr.bf16.mxu0 0
      %348 = vmatpush1.bf16.msra.mxu0 0
      %349 = vmatprep.subr.bf16.mxu0 0
      %350 = vmatpush1.bf16.msra.mxu0 0
      %351 = vmatprep.subr.bf16.mxu0 0
      %352 = vmatpush1.bf16.msra.mxu0 0
      %353 = vmatprep.subr.bf16.mxu0 0
      %354 = vmatpush1.bf16.msra.mxu0 0
      %355 = vmatprep.subr.bf16.mxu0 0
      %356 = vmatpush1.bf16.msra.mxu0 0
      %357 = vmatprep.subr.bf16.mxu0 0
      %358 = vmatpush1.bf16.msra.mxu0 %v312
      %359 = vmatprep.subr.bf16.mxu0 0
      %360 = vmatpush1.bf16.msra.mxu0 %v311
      %361 = vmatprep.subr.bf16.mxu0 0
      %362 = vmatpush2.bf16.msra.mxu0 0
      %363 = vmatprep.subr.bf16.mxu0 0
      %364 = vmatpush2.bf16.msra.mxu0 0
      %365 = vmatprep.subr.bf16.mxu0 0
      %366 = vmatpush2.bf16.msra.mxu0 0
      %367 = vmatprep.subr.bf16.mxu0 0
      %368 = vmatpush2.bf16.msra.mxu0 0
      %369 = vmatprep.subr.bf16.mxu0 0
      %370 = vmatpush2.bf16.msra.mxu0 0
      %371 = vmatprep.subr.bf16.mxu0 0
      %372 = vmatpush2.bf16.msra.mxu0 0
      %373 = vmatprep.subr.bf16.mxu0 0
      %374 = vmatpush2.bf16.msra.mxu0 0
      %375 = vmatprep.subr.bf16.mxu0 0
      %376 = vmatpush2.bf16.msra.mxu0 0
      %377 = vmatprep.mubr.bf16.mxu0 0
      %378 = vmatmul.mubr.bf16.gmra.mxu0 %v322
      %v379 = vpop.f32.mrf.mxu0
      %v380 = vadd.f32 %v318, %v379
      %v381 = vpop.f32.mrf.mxu0
      %v382 = vpop.f32.mrf.mxu0
      %v383 = vadd.f32 %v318, %v382
      %v384 = vpop.f32.mrf.mxu0
      %385 = vmatprep.mubr.bf16.mxu0 0
      %386 = vmatmul.mubr.bf16.gmra.mxu0 %v325
      %v387 = vpop.f32.mrf.mxu0
      %v388 = vadd.f32 %v318, %v387
      %v389 = vpop.f32.mrf.mxu0
      %v390 = vpop.f32.mrf.mxu0
      %v391 = vadd.f32 %v318, %v390
      %v392 = vpop.f32.mrf.mxu0
      %393 = vmatprep.mubr.bf16.mxu0 0
      %394 = vmatmul.mubr.bf16.gmra.mxu0 %v328
      %v395 = vpop.f32.mrf.mxu0
      %v396 = vadd.f32 %v318, %v395
      %v397 = vpop.f32.mrf.mxu0
      %v398 = vpop.f32.mrf.mxu0
      %v399 = vadd.f32 %v318, %v398
      %v400 = vpop.f32.mrf.mxu0
      %401 = vmatprep.mubr.bf16.mxu0 0
      %402 = vmatmul.mubr.bf16.gmra.mxu0 %v331
      %v403 = vpop.f32.mrf.mxu0
      %v404 = vadd.f32 %v318, %v403
      %v405 = vpop.f32.mrf.mxu0
      %v406 = vpop.f32.mrf.mxu0
      %v407 = vadd.f32 %v318, %v406
      %v408 = vpop.f32.mrf.mxu0
      %409 = vmatprep.mubr.bf16.mxu0 0
      %410 = vmatmul.mubr.bf16.gmra.mxu0 %v334
      %v411 = vpop.f32.mrf.mxu0
      %v412 = vadd.f32 %v318, %v411
      %v413 = vpop.f32.mrf.mxu0
      %v414 = vpop.f32.mrf.mxu0
      %v415 = vadd.f32 %v318, %v414
      %v416 = vpop.f32.mrf.mxu0
      %417 = vmatprep.mubr.bf16.mxu0 0
      %418 = vmatmul.mubr.bf16.gmra.mxu0 %v337
      %v419 = vpop.f32.mrf.mxu0
      %v420 = vadd.f32 %v318, %v419
      %v421 = vpop.f32.mrf.mxu0
      %v422 = vpop.f32.mrf.mxu0
      %v423 = vadd.f32 %v318, %v422
      %v424 = vpop.f32.mrf.mxu0
      %425 = vmatprep.mubr.bf16.mxu0 0
      %426 = vmatmul.mubr.bf16.gmra.mxu0 %v340
      %v427 = vpop.f32.mrf.mxu0
      %v428 = vadd.f32 %v318, %v427
      %v429 = vpop.f32.mrf.mxu0
      %v430 = vpop.f32.mrf.mxu0
      %v431 = vadd.f32 %v318, %v430
      %v432 = vpop.f32.mrf.mxu0
      %433 = vmatprep.mubr.bf16.mxu0 0
      %434 = vmatmul.mubr.bf16.gmra.mxu0 %v343
      %v435 = vpop.f32.mrf.mxu0
      %v436 = vadd.f32 %v318, %v435
      %v437 = vpop.f32.mrf.mxu0
      %v438 = vpop.f32.mrf.mxu0
      %v439 = vadd.f32 %v318, %v438
      %v440 = vpop.f32.mrf.mxu0
      %441 = vdwg.mxu0
      %v442 = vmax.f32 %v380, 0.0
      %v443 = vmax.f32 %v383, 0.0
      %v444 = vmax.f32 %v388, 0.0
      %v445 = vmax.f32 %v391, 0.0
      %v446 = vmax.f32 %v396, 0.0
      %v447 = vmax.f32 %v399, 0.0
      %v448 = vmax.f32 %v404, 0.0
      %v449 = vmax.f32 %v407, 0.0
      %v450 = vmax.f32 %v412, 0.0
      %v451 = vmax.f32 %v415, 0.0
      %v452 = vmax.f32 %v420, 0.0
      %v453 = vmax.f32 %v423, 0.0
      %v454 = vmax.f32 %v428, 0.0
      %v455 = vmax.f32 %v431, 0.0
      %v456 = vmax.f32 %v436, 0.0
      %v457 = vmax.f32 %v439, 0.0
      %v458 = vpack.c.bf16 %v443, %v442
      %v459 = vpack.c.bf16 %v445, %v444
      %v460 = vpack.c.bf16 %v447, %v446
      %v461 = vpack.c.bf16 %v449, %v448
      %v462 = vpack.c.bf16 %v451, %v450
      %v463 = vpack.c.bf16 %v453, %v452
      %v464 = vpack.c.bf16 %v455, %v454
      %v465 = vpack.c.bf16 %v457, %v456
      %v466 = vld [vmem:[%s3] sm:$0xff]
      %v467 = vld [vmem:[%s3 + $0x8] sm:$0xff]
      %v468 = vld [vmem:[%s3 + $0x10] sm:$0xff]
      %v469 = vld [vmem:[%s3 + $0x18] sm:$0xff]
      %v470 = vpack.c.bf16 %v467, %v466
      %v471 = vpack.c.bf16 %v469, %v468
      %v472 = vld [vmem:[%s4] sm:$0x1]
      %v474 = vlaneseq
      %v475 = vshrl.u32 %v474, 7
      %v476 = vsub.s32 0, %v475
      %v477 = vrot.slane %v472, %v476
      %v480 = vsel %vm320, %v458, 0
      %v483 = vsel %vm320, %v459, 0
      %v486 = vsel %vm320, %v460, 0
      %v489 = vsel %vm320, %v461, 0
      %v492 = vsel %vm320, %v462, 0
      %v495 = vsel %vm320, %v463, 0
      %v498 = vsel %vm320, %v464, 0
      %v501 = vsel %vm320, %v465, 0
      %503 = vmatprep.subr.bf16.mxu0 0
      %504 = vmatpush1.bf16.msra.mxu0 0
      %505 = vmatprep.subr.bf16.mxu0 0
      %506 = vmatpush1.bf16.msra.mxu0 0
      %507 = vmatprep.subr.bf16.mxu0 0
      %508 = vmatpush1.bf16.msra.mxu0 0
      %509 = vmatprep.subr.bf16.mxu0 0
      %510 = vmatpush1.bf16.msra.mxu0 0
      %511 = vmatprep.subr.bf16.mxu0 0
      %512 = vmatpush1.bf16.msra.mxu0 0
      %513 = vmatprep.subr.bf16.mxu0 0
      %514 = vmatpush1.bf16.msra.mxu0 0
      %515 = vmatprep.subr.bf16.mxu0 0
      %516 = vmatpush1.bf16.msra.mxu0 %v471
      %517 = vmatprep.subr.bf16.mxu0 0
      %518 = vmatpush1.bf16.msra.mxu0 %v470
      %519 = vmatprep.subr.bf16.mxu0 0
      %520 = vmatpush2.bf16.msra.mxu0 0
      %521 = vmatprep.subr.bf16.mxu0 0
      %522 = vmatpush2.bf16.msra.mxu0 0
      %523 = vmatprep.subr.bf16.mxu0 0
      %524 = vmatpush2.bf16.msra.mxu0 0
      %525 = vmatprep.subr.bf16.mxu0 0
      %526 = vmatpush2.bf16.msra.mxu0 0
      %527 = vmatprep.subr.bf16.mxu0 0
      %528 = vmatpush2.bf16.msra.mxu0 0
      %529 = vmatprep.subr.bf16.mxu0 0
      %530 = vmatpush2.bf16.msra.mxu0 0
      %531 = vmatprep.subr.bf16.mxu0 0
      %532 = vmatpush2.bf16.msra.mxu0 0
      %533 = vmatprep.subr.bf16.mxu0 0
      %534 = vmatpush2.bf16.msra.mxu0 0
      %535 = vmatprep.mubr.bf16.mxu0 0
      %536 = vmatmul.mubr.bf16.gmra.mxu0 %v480
      %v537 = vpop.f32.mrf.mxu0
      %v538 = vadd.f32 %v477, %v537
      %v539 = vpop.f32.mrf.mxu0
      %v540 = vpop.f32.mrf.mxu0
      %v541 = vadd.f32 %v477, %v540
      %v542 = vpop.f32.mrf.mxu0
      %543 = vmatprep.mubr.bf16.mxu0 0
      %544 = vmatmul.mubr.bf16.gmra.mxu0 %v483
      %v545 = vpop.f32.mrf.mxu0
      %v546 = vadd.f32 %v477, %v545
      %v547 = vpop.f32.mrf.mxu0
      %v548 = vpop.f32.mrf.mxu0
      %v549 = vadd.f32 %v477, %v548
      %v550 = vpop.f32.mrf.mxu0
      %551 = vmatprep.mubr.bf16.mxu0 0
      %552 = vmatmul.mubr.bf16.gmra.mxu0 %v486
      %v553 = vpop.f32.mrf.mxu0
      %v554 = vadd.f32 %v477, %v553
      %v555 = vpop.f32.mrf.mxu0
      %v556 = vpop.f32.mrf.mxu0
      %v557 = vadd.f32 %v477, %v556
      %v558 = vpop.f32.mrf.mxu0
      %559 = vmatprep.mubr.bf16.mxu0 0
      %560 = vmatmul.mubr.bf16.gmra.mxu0 %v489
      %v561 = vpop.f32.mrf.mxu0
      %v562 = vadd.f32 %v477, %v561
      %v563 = vpop.f32.mrf.mxu0
      %v564 = vpop.f32.mrf.mxu0
      %v565 = vadd.f32 %v477, %v564
      %v566 = vpop.f32.mrf.mxu0
      %567 = vmatprep.mubr.bf16.mxu0 0
      %568 = vmatmul.mubr.bf16.gmra.mxu0 %v492
      %v569 = vpop.f32.mrf.mxu0
      %v570 = vadd.f32 %v477, %v569
      %v571 = vpop.f32.mrf.mxu0
      %v572 = vpop.f32.mrf.mxu0
      %v573 = vadd.f32 %v477, %v572
      %v574 = vpop.f32.mrf.mxu0
      %575 = vmatprep.mubr.bf16.mxu0 0
      %576 = vmatmul.mubr.bf16.gmra.mxu0 %v495
      %v577 = vpop.f32.mrf.mxu0
      %v578 = vadd.f32 %v477, %v577
      %v579 = vpop.f32.mrf.mxu0
      %v580 = vpop.f32.mrf.mxu0
      %v581 = vadd.f32 %v477, %v580
      %v582 = vpop.f32.mrf.mxu0
      %583 = vmatprep.mubr.bf16.mxu0 0
      %584 = vmatmul.mubr.bf16.gmra.mxu0 %v498
      %v585 = vpop.f32.mrf.mxu0
      %v586 = vadd.f32 %v477, %v585
      %v587 = vpop.f32.mrf.mxu0
      %v588 = vpop.f32.mrf.mxu0
      %v589 = vadd.f32 %v477, %v588
      %v590 = vpop.f32.mrf.mxu0
      %591 = vmatprep.mubr.bf16.mxu0 0
      %592 = vmatmul.mubr.bf16.gmra.mxu0 %v501
      %v593 = vpop.f32.mrf.mxu0
      %v594 = vadd.f32 %v477, %v593
      %v595 = vpop.f32.mrf.mxu0
      %v596 = vpop.f32.mrf.mxu0
      %v597 = vadd.f32 %v477, %v596
      %v598 = vpop.f32.mrf.mxu0
      %599 = vdwg.mxu0
      %v600 = vmax.f32 %v538, 0.0
      %v601 = vmax.f32 %v541, 0.0
      %v602 = vmax.f32 %v546, 0.0
      %v603 = vmax.f32 %v549, 0.0
      %v604 = vmax.f32 %v554, 0.0
      %v605 = vmax.f32 %v557, 0.0
      %v606 = vmax.f32 %v562, 0.0
      %v607 = vmax.f32 %v565, 0.0
      %v608 = vmax.f32 %v570, 0.0
      %v609 = vmax.f32 %v573, 0.0
      %v610 = vmax.f32 %v578, 0.0
      %v611 = vmax.f32 %v581, 0.0
      %v612 = vmax.f32 %v586, 0.0
      %v613 = vmax.f32 %v589, 0.0
      %v614 = vmax.f32 %v594, 0.0
      %v615 = vmax.f32 %v597, 0.0
      %v616 = vpack.c.bf16 %v601, %v600
      %v617 = vpack.c.bf16 %v603, %v602
      %v618 = vpack.c.bf16 %v605, %v604
      %v619 = vpack.c.bf16 %v607, %v606
      %v620 = vpack.c.bf16 %v609, %v608
      %v621 = vpack.c.bf16 %v611, %v610
      %v622 = vpack.c.bf16 %v613, %v612
      %v623 = vpack.c.bf16 %v615, %v614
      %v624 = vld [vmem:[%s5] sm:$0xff]
      %v625 = vld [vmem:[%s5 + $0x8] sm:$0xff]
      %v626 = vld [vmem:[%s5 + $0x10] sm:$0xff]
      %v627 = vld [vmem:[%s5 + $0x18] sm:$0xff]
      %v628 = vpack.c.bf16 %v625, %v624
      %v629 = vpack.c.bf16 %v627, %v626
      %v630 = vld [vmem:[%s6] sm:$0x1]
      %v632 = vlaneseq
      %v633 = vshrl.u32 %v632, 7
      %v634 = vsub.s32 0, %v633
      %v635 = vrot.slane %v630, %v634
      %v638 = vsel %vm320, %v616, 0
      %v641 = vsel %vm320, %v617, 0
      %v644 = vsel %vm320, %v618, 0
      %v647 = vsel %vm320, %v619, 0
      %v650 = vsel %vm320, %v620, 0
      %v653 = vsel %vm320, %v621, 0
      %v656 = vsel %vm320, %v622, 0
      %v659 = vsel %vm320, %v623, 0
      %661 = vmatprep.subr.bf16.mxu0 0
      %662 = vmatpush1.bf16.msra.mxu0 0
      %663 = vmatprep.subr.bf16.mxu0 0
      %664 = vmatpush1.bf16.msra.mxu0 0
      %665 = vmatprep.subr.bf16.mxu0 0
      %666 = vmatpush1.bf16.msra.mxu0 0
      %667 = vmatprep.subr.bf16.mxu0 0
      %668 = vmatpush1.bf16.msra.mxu0 0
      %669 = vmatprep.subr.bf16.mxu0 0
      %670 = vmatpush1.bf16.msra.mxu0 0
      %671 = vmatprep.subr.bf16.mxu0 0
      %672 = vmatpush1.bf16.msra.mxu0 0
      %673 = vmatprep.subr.bf16.mxu0 0
      %674 = vmatpush1.bf16.msra.mxu0 %v629
      %675 = vmatprep.subr.bf16.mxu0 0
      %676 = vmatpush1.bf16.msra.mxu0 %v628
      %677 = vmatprep.subr.bf16.mxu0 0
      %678 = vmatpush2.bf16.msra.mxu0 0
      %679 = vmatprep.subr.bf16.mxu0 0
      %680 = vmatpush2.bf16.msra.mxu0 0
      %681 = vmatprep.subr.bf16.mxu0 0
      %682 = vmatpush2.bf16.msra.mxu0 0
      %683 = vmatprep.subr.bf16.mxu0 0
      %684 = vmatpush2.bf16.msra.mxu0 0
      %685 = vmatprep.subr.bf16.mxu0 0
      %686 = vmatpush2.bf16.msra.mxu0 0
      %687 = vmatprep.subr.bf16.mxu0 0
      %688 = vmatpush2.bf16.msra.mxu0 0
      %689 = vmatprep.subr.bf16.mxu0 0
      %690 = vmatpush2.bf16.msra.mxu0 0
      %691 = vmatprep.subr.bf16.mxu0 0
      %692 = vmatpush2.bf16.msra.mxu0 0
      %693 = vmatprep.mubr.bf16.mxu0 0
      %694 = vmatmul.mubr.bf16.gmra.mxu0 %v638
      %v695 = vpop.f32.mrf.mxu0
      %v696 = vadd.f32 %v635, %v695
      %v697 = vpop.f32.mrf.mxu0
      %v698 = vpop.f32.mrf.mxu0
      %v699 = vadd.f32 %v635, %v698
      %v700 = vpop.f32.mrf.mxu0
      %701 = vmatprep.mubr.bf16.mxu0 0
      %702 = vmatmul.mubr.bf16.gmra.mxu0 %v641
      %v703 = vpop.f32.mrf.mxu0
      %v704 = vadd.f32 %v635, %v703
      %v705 = vpop.f32.mrf.mxu0
      %v706 = vpop.f32.mrf.mxu0
      %v707 = vadd.f32 %v635, %v706
      %v708 = vpop.f32.mrf.mxu0
      %709 = vmatprep.mubr.bf16.mxu0 0
      %710 = vmatmul.mubr.bf16.gmra.mxu0 %v644
      %v711 = vpop.f32.mrf.mxu0
      %v712 = vadd.f32 %v635, %v711
      %v713 = vpop.f32.mrf.mxu0
      %v714 = vpop.f32.mrf.mxu0
      %v715 = vadd.f32 %v635, %v714
      %v716 = vpop.f32.mrf.mxu0
      %717 = vmatprep.mubr.bf16.mxu0 0
      %718 = vmatmul.mubr.bf16.gmra.mxu0 %v647
      %v719 = vpop.f32.mrf.mxu0
      %v720 = vadd.f32 %v635, %v719
      %v721 = vpop.f32.mrf.mxu0
      %v722 = vpop.f32.mrf.mxu0
      %v723 = vadd.f32 %v635, %v722
      %v724 = vpop.f32.mrf.mxu0
      %725 = vmatprep.mubr.bf16.mxu0 0
      %726 = vmatmul.mubr.bf16.gmra.mxu0 %v650
      %v727 = vpop.f32.mrf.mxu0
      %v728 = vadd.f32 %v635, %v727
      %v729 = vpop.f32.mrf.mxu0
      %v730 = vpop.f32.mrf.mxu0
      %v731 = vadd.f32 %v635, %v730
      %v732 = vpop.f32.mrf.mxu0
      %733 = vmatprep.mubr.bf16.mxu0 0
      %734 = vmatmul.mubr.bf16.gmra.mxu0 %v653
      %v735 = vpop.f32.mrf.mxu0
      %v736 = vadd.f32 %v635, %v735
      %v737 = vpop.f32.mrf.mxu0
      %v738 = vpop.f32.mrf.mxu0
      %v739 = vadd.f32 %v635, %v738
      %v740 = vpop.f32.mrf.mxu0
      %741 = vmatprep.mubr.bf16.mxu0 0
      %742 = vmatmul.mubr.bf16.gmra.mxu0 %v656
      %v743 = vpop.f32.mrf.mxu0
      %v744 = vadd.f32 %v635, %v743
      %v745 = vpop.f32.mrf.mxu0
      %v746 = vpop.f32.mrf.mxu0
      %v747 = vadd.f32 %v635, %v746
      %v748 = vpop.f32.mrf.mxu0
      %749 = vmatprep.mubr.bf16.mxu0 0
      %750 = vmatmul.mubr.bf16.gmra.mxu0 %v659
      %v751 = vpop.f32.mrf.mxu0
      %v752 = vadd.f32 %v635, %v751
      %v753 = vpop.f32.mrf.mxu0
      %v754 = vpop.f32.mrf.mxu0
      %v755 = vadd.f32 %v635, %v754
      %v756 = vpop.f32.mrf.mxu0
      %757 = vdwg.mxu0
      %v758 = vmax.f32 %v696, 0.0
      %v759 = vmax.f32 %v699, 0.0
      %v760 = vmax.f32 %v704, 0.0
      %v761 = vmax.f32 %v707, 0.0
      %v762 = vmax.f32 %v712, 0.0
      %v763 = vmax.f32 %v715, 0.0
      %v764 = vmax.f32 %v720, 0.0
      %v765 = vmax.f32 %v723, 0.0
      %v766 = vmax.f32 %v728, 0.0
      %v767 = vmax.f32 %v731, 0.0
      %v768 = vmax.f32 %v736, 0.0
      %v769 = vmax.f32 %v739, 0.0
      %v770 = vmax.f32 %v744, 0.0
      %v771 = vmax.f32 %v747, 0.0
      %v772 = vmax.f32 %v752, 0.0
      %v773 = vmax.f32 %v755, 0.0
      %774 = vst.msk [vmem:[%s280] sm:$0xff] %vm320, %v758
      %775 = vst.msk [vmem:[%s280 + $0x8] sm:$0xff] %vm320, %v759
      %776 = vst.msk [vmem:[%s280 + $0x10] sm:$0xff] %vm320, %v760
      %777 = vst.msk [vmem:[%s280 + $0x18] sm:$0xff] %vm320, %v761
      %778 = vst.msk [vmem:[%s280 + $0x20] sm:$0xff] %vm320, %v762
      %779 = vst.msk [vmem:[%s280 + $0x28] sm:$0xff] %vm320, %v763
      %780 = vst.msk [vmem:[%s280 + $0x30] sm:$0xff] %vm320, %v764
      %781 = vst.msk [vmem:[%s280 + $0x38] sm:$0xff] %vm320, %v765
      %782 = vst.msk [vmem:[%s280 + $0x40] sm:$0xff] %vm320, %v766
      %783 = vst.msk [vmem:[%s280 + $0x48] sm:$0xff] %vm320, %v767
      %784 = vst.msk [vmem:[%s280 + $0x50] sm:$0xff] %vm320, %v768
      %785 = vst.msk [vmem:[%s280 + $0x58] sm:$0xff] %vm320, %v769
      %786 = vst.msk [vmem:[%s280 + $0x60] sm:$0xff] %vm320, %v770
      %787 = vst.msk [vmem:[%s280 + $0x68] sm:$0xff] %vm320, %v771
      %788 = vst.msk [vmem:[%s280 + $0x70] sm:$0xff] %vm320, %v772
      %789 = vst.msk [vmem:[%s280 + $0x78] sm:$0xff] %vm320, %v773
      %s790 = smul.u32 16, %s18
      %p791 = scmp.lt.s32.totalorder %s790, 31
      %s792 = scalar_select %p791, %s790, 31
      %s793 = smul.addr %s792, 8
      %s794 = scalar_lea.vmem %s7, %s793
      // Predicated region
      $region49: #{tpu_custom_call.1} parent=47 // pred_check
        %p795 = pneg %p188
      $region50: #{tpu_custom_call.1} parent=47 // pred_check_branch
        %797 = sbr.rel (%p795) target = $region52
      $region51: #{tpu_custom_call.1} parent=47 // pred_region
        %s798 = smul.u32 16, %s18
      $region52: #{tpu_custom_call.1} parent=47 // pred_fallthru
        _
    $region48: #{tpu_custom_call.1} parent=5 // pred_fallthru
      _
    %p799 = scmp.le.s32.totalorder 2, %s13
    // Predicated region
    $region53: #{tpu_custom_call.1} parent=5 // pred_check
      %p800 = pneg %p799
    $region54: #{tpu_custom_call.1} parent=5 // pred_check_branch
      %802 = sbr.rel (%p800) target = $region56
    $region55: #{tpu_custom_call.1} parent=5 // pred_region
      %s803 = ssub.s32 %s13, 2
      // Predicated region
      $region57: #{tpu_custom_call.1} parent=55 // pred_check
        %p804 = pneg %p194
      $region58: #{tpu_custom_call.1} parent=55 // pred_check_branch
        %806 = sbr.rel (%p804) target = $region60
      $region59: #{tpu_custom_call.1} parent=55 // pred_region
        %s807 = smul.u32 16, %s19
        %p808 = scmp.lt.s32.totalorder %s807, 31
        %s809 = scalar_select %p808, %s807, 31
        %s810 = smul.addr %s809, 8
        %s811 = scalar_lea.vmem %s7, %s810
      $region60: #{tpu_custom_call.1} parent=55 // pred_fallthru
        _
    $region56: #{tpu_custom_call.1} parent=5 // pred_fallthru
      _
  $region6: #{tpu_custom_call.1} parent=0 // loop_footer
    %s17 = sadd.s32 1, %s13
  $region7: #{tpu_custom_call.1} parent=0 // loop_footer_branch
    %12 = sbr.rel target = $region3
  $region8: #{tpu_custom_call.1} parent=0 // loop_exit
    _

</llo_original>
